<compile_context>
chip_gen: v7x
topology: tpu7x:2x2x1
jax: 0.10.0
libtpu: 0.0.40
codegen_flags: <defaults>
</compile_context>

<pallas_src>
import functools

import jax
import jax.numpy as jnp
from jax.experimental import pallas as pl
from jax.experimental.pallas import tpu as pltpu

_LANE = 128
# (2048, 128) f32 = 1 MiB per operand per block -> 4 MiB pipelined with two
# operands and double-buffering; safe under v5e 16 MiB / v6e 32 MiB / v7x
# 32 MiB scoped-VMEM defaults. Multiple of 8/16/32 so any input dtype tiles.
_MAX_BLK_ROWS = 2048


def _smape_kernel(x_ref, t_ref, o_ref,
                  diff_acc, mag_acc,
                  *, n_elems, epsilon, blk_rows, total_rows, needs_mask):
    i = pl.program_id(0)

    @pl.when(i == 0)
    def _init():
        diff_acc[...] = jnp.zeros_like(diff_acc)
        mag_acc[...] = jnp.zeros_like(mag_acc)

    # Native dtype comes in through the BlockSpec; cast on the VPU here.
    x = x_ref[...].astype(jnp.float32)
    t = t_ref[...].astype(jnp.float32)

    if needs_mask:
        # Only compiled in when rows % blk_rows != 0 (partial last block):
        # zero out the out-of-range rows so they are sum-neutral.
        row = jax.lax.broadcasted_iota(jnp.int32, x.shape, 0)
        valid = (i * blk_rows + row) < total_rows
        x = jnp.where(valid, x, 0.0)
        t = jnp.where(valid, t, 0.0)

    abs_diff = jnp.abs(x - t)          # numerator contribution
    abs_mag = jnp.abs(x) + jnp.abs(t)  # denominator contribution (fused)

    # Lane-parallel accumulation: fold the sublane axis into a (1, 128)
    # accumulator (VPU adds); the cross-lane reduce is deferred to finalize.
    diff_acc[...] += jnp.sum(abs_diff, axis=0, keepdims=True)
    mag_acc[...] += jnp.sum(abs_mag, axis=0, keepdims=True)

    @pl.when(i == pl.num_programs(0) - 1)
    def _finalize():
        total_diff = jnp.sum(diff_acc[...], keepdims=True)   # (1, 1)
        total_mag = jnp.sum(mag_acc[...], keepdims=True)     # (1, 1)
        l1 = total_diff / n_elems                             # L1Loss mean
        o_ref[...] = l1 / (total_mag + epsilon)


def smape_loss(inputs, targets, epsilon=1e-6):
    assert inputs.shape == targets.shape
    n = int(inputs.size)

    # Keep the native dtype; the in-kernel cast handles bf16 etc. without
    # doubling the DMA bytes for sub-32-bit inputs.
    x = jnp.ravel(inputs)
    t = jnp.ravel(targets)

    rows = pl.cdiv(n, _LANE)
    pad = rows * _LANE - n
    if pad:
        # Only when the flattened size isn't lane-aligned; <128 zeros, which
        # contribute 0 to all sums.  (Block-multiple padding is avoided via
        # in-kernel row masking.)
        x = jnp.pad(x, (0, pad))
        t = jnp.pad(t, (0, pad))
    x = x.reshape(rows, _LANE)
    t = t.reshape(rows, _LANE)

    if rows <= _MAX_BLK_ROWS:
        blk_rows = rows              # single step; block == full array dims
    else:
        blk_rows = _MAX_BLK_ROWS
    grid = (pl.cdiv(rows, blk_rows),)
    needs_mask = (rows % blk_rows) != 0

    kernel = functools.partial(
        _smape_kernel,
        n_elems=float(n), epsilon=float(epsilon),
        blk_rows=blk_rows, total_rows=rows, needs_mask=needs_mask)

    out = pl.pallas_call(
        kernel,
        out_shape=jax.ShapeDtypeStruct((1, 1), jnp.float32),
        grid_spec=pltpu.PrefetchScalarGridSpec(
            num_scalar_prefetch=0,
            grid=grid,
            in_specs=[
                pl.BlockSpec((blk_rows, _LANE), lambda i: (i, 0)),
                pl.BlockSpec((blk_rows, _LANE), lambda i: (i, 0)),
            ],
            out_specs=pl.BlockSpec((1, 1), lambda i: (0, 0)),
            scratch_shapes=[
                pltpu.VMEM((1, _LANE), jnp.float32),   # sum |x - t| per lane
                pltpu.VMEM((1, _LANE), jnp.float32),   # sum |x| + |t| per lane
            ],
        ),
        compiler_params=pltpu.CompilerParams(
            dimension_semantics=("arbitrary",)),   # grid axis is a reduction
    )(x, t)
    return out[0, 0]


def _smape_ref(inputs, targets, epsilon=1e-6):
    x = inputs.astype(jnp.float32)
    t = targets.astype(jnp.float32)
    l1 = jnp.mean(jnp.abs(x - t))
    return l1 / (jnp.sum(jnp.abs(x)) + jnp.sum(jnp.abs(t)) + epsilon)


if __name__ == "__main__":
    key = jax.random.PRNGKey(0)
    k1, k2 = jax.random.split(key)
    # Small NCHW-shaped example inputs (the loss is shape-agnostic).
    inputs = jax.random.normal(k1, (2, 4, 16, 16), dtype=jnp.float32)
    targets = jax.random.normal(k2, (2, 4, 16, 16), dtype=jnp.float32)

    out = smape_loss(inputs, targets)
    out = jax.block_until_ready(out)

    ref = _smape_ref(inputs, targets)
    assert jnp.allclose(out, ref, rtol=1e-5, atol=1e-7), (out, ref)

    # Also exercise the multi-step + partial-last-block path at a modest size.
    k3, k4 = jax.random.split(k2)
    big_a = jax.random.normal(k3, (3, 5000, 128), dtype=jnp.float32)
    big_b = jax.random.normal(k4, (3, 5000, 128), dtype=jnp.float32)
    out2 = jax.block_until_ready(smape_loss(big_a, big_b))
    ref2 = _smape_ref(big_a, big_b)
    assert jnp.allclose(out2, ref2, rtol=1e-4, atol=1e-8), (out2, ref2)

    print("KERNEL_OK")
</pallas_src>

<mosaic_0001>
module attributes {stable_mosaic.version = 11 : i64} {
  func.func @_smape_kernel(%arg0: i32, %arg1: memref<16x128xf32, #tpu.memory_space<vmem>>, %arg2: memref<16x128xf32, #tpu.memory_space<vmem>>, %arg3: memref<1x1xf32, #tpu.memory_space<vmem>>, %arg4: memref<1x128xf32, #tpu.memory_space<vmem>>, %arg5: memref<1x128xf32, #tpu.memory_space<vmem>>) attributes {dimension_semantics = [#tpu.dimension_semantics<arbitrary>], iteration_bounds = array<i64: 1>, scalar_prefetch = 0 : i64, scratch_operands = 2 : i64, tpu.core_type = #tpu.core_type<tc>, window_params = [{transform_indices = @transform_0, window_bounds = array<i64: 16, 128>}, {transform_indices = @transform_1, window_bounds = array<i64: 16, 128>}, {pipeline_mode = #tpu.pipeline_mode<synchronous>, transform_indices = @transform_2, window_bounds = array<i64: 1, 1>}]} {
    %c0_i32 = arith.constant 0 : i32
    %0 = arith.cmpi eq, %arg0, %c0_i32 : i32
    %1 = arith.extui %0 : i1 to i32
    %c0_i32_0 = arith.constant 0 : i32
    %2 = arith.cmpi ne, %1, %c0_i32_0 : i32
    scf.if %2 {
      %cst_15 = arith.constant 0.000000e+00 : f32
      %23 = vector.broadcast %cst_15 : f32 to vector<1x128xf32>
      %c0_16 = arith.constant 0 : index
      %c0_17 = arith.constant 0 : index
      %24 = vector.load %arg4[%c0_16, %c0_17] : memref<1x128xf32, #tpu.memory_space<vmem>>, vector<1x128xf32>
      tpu.vector_store %arg4[%c0_16, %c0_17], %23 {strides = array<i32>} : memref<1x128xf32, #tpu.memory_space<vmem>>, vector<1x128xf32>,
      %cst_18 = arith.constant 0.000000e+00 : f32
      %25 = vector.broadcast %cst_18 : f32 to vector<1x128xf32>
      %c0_19 = arith.constant 0 : index
      %c0_20 = arith.constant 0 : index
      %26 = vector.load %arg5[%c0_19, %c0_20] : memref<1x128xf32, #tpu.memory_space<vmem>>, vector<1x128xf32>
      tpu.vector_store %arg5[%c0_19, %c0_20], %25 {strides = array<i32>} : memref<1x128xf32, #tpu.memory_space<vmem>>, vector<1x128xf32>,
    } else {
    }
    %c0 = arith.constant 0 : index
    %c0_1 = arith.constant 0 : index
    %3 = vector.load %arg1[%c0, %c0_1] : memref<16x128xf32, #tpu.memory_space<vmem>>, vector<16x128xf32>
    %c0_2 = arith.constant 0 : index
    %c0_3 = arith.constant 0 : index
    %4 = vector.load %arg2[%c0_2, %c0_3] : memref<16x128xf32, #tpu.memory_space<vmem>>, vector<16x128xf32>
    %5 = arith.subf %3, %4 : vector<16x128xf32>
    %6 = math.absf %5 : vector<16x128xf32>
    %7 = math.absf %3 : vector<16x128xf32>
    %8 = math.absf %4 : vector<16x128xf32>
    %9 = arith.addf %7, %8 : vector<16x128xf32>
    %c0_4 = arith.constant 0 : index
    %c0_5 = arith.constant 0 : index
    %10 = vector.load %arg4[%c0_4, %c0_5] : memref<1x128xf32, #tpu.memory_space<vmem>>, vector<1x128xf32>
    %cst = arith.constant dense<0.000000e+00> : vector<128xf32>
    %11 = vector.multi_reduction <add>, %6, %cst [0] : vector<16x128xf32> to vector<128xf32>
    %12 = vector.shape_cast %11 : vector<128xf32> to vector<1x128xf32>
    %13 = arith.addf %10, %12 : vector<1x128xf32>
    %c0_6 = arith.constant 0 : index
    %c0_7 = arith.constant 0 : index
    %14 = vector.load %arg4[%c0_6, %c0_7] : memref<1x128xf32, #tpu.memory_space<vmem>>, vector<1x128xf32>
    tpu.vector_store %arg4[%c0_6, %c0_7], %13 {strides = array<i32>} : memref<1x128xf32, #tpu.memory_space<vmem>>, vector<1x128xf32>,
    %c0_8 = arith.constant 0 : index
    %c0_9 = arith.constant 0 : index
    %15 = vector.load %arg5[%c0_8, %c0_9] : memref<1x128xf32, #tpu.memory_space<vmem>>, vector<1x128xf32>
    %cst_10 = arith.constant dense<0.000000e+00> : vector<128xf32>
    %16 = vector.multi_reduction <add>, %9, %cst_10 [0] : vector<16x128xf32> to vector<128xf32>
    %17 = vector.shape_cast %16 : vector<128xf32> to vector<1x128xf32>
    %18 = arith.addf %15, %17 : vector<1x128xf32>
    %c0_11 = arith.constant 0 : index
    %c0_12 = arith.constant 0 : index
    %19 = vector.load %arg5[%c0_11, %c0_12] : memref<1x128xf32, #tpu.memory_space<vmem>>, vector<1x128xf32>
    tpu.vector_store %arg5[%c0_11, %c0_12], %18 {strides = array<i32>} : memref<1x128xf32, #tpu.memory_space<vmem>>, vector<1x128xf32>,
    %c0_i32_13 = arith.constant 0 : i32
    %20 = arith.cmpi eq, %arg0, %c0_i32_13 : i32
    %21 = arith.extui %20 : i1 to i32
    %c0_i32_14 = arith.constant 0 : i32
    %22 = arith.cmpi ne, %21, %c0_i32_14 : i32
    scf.if %22 {
      %c0_15 = arith.constant 0 : index
      %c0_16 = arith.constant 0 : index
      %23 = vector.load %arg4[%c0_15, %c0_16] : memref<1x128xf32, #tpu.memory_space<vmem>>, vector<1x128xf32>
      %24 = vector.shape_cast %23 : vector<1x128xf32> to vector<1x1x128xf32>
      %cst_17 = arith.constant dense<0.000000e+00> : vector<1xf32>
      %25 = vector.multi_reduction <add>, %24, %cst_17 [1, 2] : vector<1x1x128xf32> to vector<1xf32>
      %26 = vector.shape_cast %25 : vector<1xf32> to vector<1x1x1xf32>
      %27 = vector.extract %26[0, 0, 0] : f32 from vector<1x1x1xf32>
      %28 = vector.broadcast %27 : f32 to vector<1x1xf32>
      %c0_18 = arith.constant 0 : index
      %c0_19 = arith.constant 0 : index
      %29 = vector.load %arg5[%c0_18, %c0_19] : memref<1x128xf32, #tpu.memory_space<vmem>>, vector<1x128xf32>
      %30 = vector.shape_cast %29 : vector<1x128xf32> to vector<1x1x128xf32>
      %cst_20 = arith.constant dense<0.000000e+00> : vector<1xf32>
      %31 = vector.multi_reduction <add>, %30, %cst_20 [1, 2] : vector<1x1x128xf32> to vector<1xf32>
      %32 = vector.shape_cast %31 : vector<1xf32> to vector<1x1x1xf32>
      %33 = vector.extract %32[0, 0, 0] : f32 from vector<1x1x1xf32>
      %34 = vector.broadcast %33 : f32 to vector<1x1xf32>
      %cst_21 = arith.constant 2.048000e+03 : f32
      %35 = vector.broadcast %cst_21 : f32 to vector<1x1xf32>
      %36 = arith.divf %28, %35 : vector<1x1xf32>
      %cst_22 = arith.constant 9.99999997E-7 : f32
      %37 = vector.broadcast %cst_22 : f32 to vector<1x1xf32>
      %38 = arith.addf %34, %37 : vector<1x1xf32>
      %39 = arith.divf %36, %38 : vector<1x1xf32>
      %c0_23 = arith.constant 0 : index
      %c0_24 = arith.constant 0 : index
      %40 = vector.load %arg3[%c0_23, %c0_24] : memref<1x1xf32, #tpu.memory_space<vmem>>, vector<1x1xf32>
      tpu.vector_store %arg3[%c0_23, %c0_24], %39 {strides = array<i32>} : memref<1x1xf32, #tpu.memory_space<vmem>>, vector<1x1xf32>,
    } else {
    }
    return
  }
  func.func @transform_0(%arg0: i32) -> (i32, i32) {
    %c0_i32 = arith.constant 0 : i32
    %c0_i32_0 = arith.constant 0 : i32
    return %arg0, %c0_i32 : i32, i32
  }
  func.func @transform_1(%arg0: i32) -> (i32, i32) {
    %c0_i32 = arith.constant 0 : i32
    %c0_i32_0 = arith.constant 0 : i32
    return %arg0, %c0_i32 : i32, i32
  }
  func.func @transform_2(%arg0: i32) -> (i32, i32) {
    %c0_i32 = arith.constant 0 : i32
    %c0_i32_0 = arith.constant 0 : i32
    %c0_i32_1 = arith.constant 0 : i32
    return %c0_i32, %c0_i32_0 : i32, i32
  }
}

</mosaic_0001>

<llo_original>
// kernel: tpu_custom_call.1
$region0: #{tpu_custom_call.1}
  #allocation0 [shape = 'u32[]', space=smem, size = 0x4, offset = 0x4, fixed_abs, tag = 'smem constant byte address 0x4 - core index']
  #allocation1 [shape = 'u32[144,128]{1,0:T(1,128)}', space=vmem, size = 0x12000, scoped, tag = 'internal scratch']
  #allocation2 [shape = 'f32[1,128]{1,0:T(1,128)}', space=vmem, size = 0x200, scoped, tag = 'scratch operand']
  #allocation3 [shape = 'f32[1,128]{1,0:T(1,128)}', space=vmem, size = 0x200, scoped, tag = 'scratch operand']
  %s0 = inlined_call_operand.hbm [shape: f32[16,128], index: 0, kind: input, shape index: {}]
  %s1 = inlined_call_operand.hbm [shape: f32[16,128], index: 1, kind: input, shape index: {}]
  %s2 = inlined_call_operand.hbm [shape: f32[1,1], index: 2, kind: output, shape index: {}]
  %s3 = sld [smem:[#allocation0]]
  $region34: #{tpu_custom_call.1} parent=0
    _
  %s5 = ssub.s32 1, %s3
  %s6 = scalar_select 0, %s5, %s3
  $region1: #{tpu_custom_call.1} parent=0
    #allocation4 [shape = 'u8[8192]{0}', space=vmem, size = 0x2000, scoped, tag = 'input window, operand 0, single buffered']
    #allocation5 [shape = 's32[1]{0}', space=sflag, size = 0x4, scoped, tag = 'scoped memory for tpu_custom_call.1']
    #allocation6 [shape = 's32[1]{0}', space=sflag, size = 0x4, scoped, tag = 'scoped memory for tpu_custom_call.1']
    #allocation7 [shape = 'u8[8192]{0}', space=vmem, size = 0x2000, scoped, tag = 'input window, operand 1, single buffered']
    #allocation8 [shape = 's32[1]{0}', space=sflag, size = 0x4, scoped, tag = 'scoped memory for tpu_custom_call.1']
    #allocation9 [shape = 'u8[512]{0}', space=vmem, size = 0x400, scoped, tag = 'output window, operand 0, single buffered']
    %7 = vsyncpa [#allocation5], 0
    %8 = vsyncpa [#allocation8], 0
    %9 = vsyncpa [#allocation6], 0
    // Predicated region
    $region2: #{tpu_custom_call.1} parent=1 // pred_check
      _
    $region3: #{tpu_custom_call.1} parent=1 // pred_check_branch
      %11 = sbr.rel (0) target = $region5
    $region4: #{tpu_custom_call.1} parent=1 // pred_region
      %s13 = ssub.s32 256, 256
      %14 = vsyncadd [#allocation5], %s13
      %s15 = sshll.u32 [#allocation4], 4
      %s16 = int_to_ptr.vmem [resolvable:$true] %s15
      %21 = dma.hbm_to_vmem [thread:$0]  %s0, 256, %s16, [#allocation5], 128, 128, 8
    $region5: #{tpu_custom_call.1} parent=1 // pred_fallthru
      _
    // Predicated region
    $region6: #{tpu_custom_call.1} parent=1 // pred_check
      _
    $region7: #{tpu_custom_call.1} parent=1 // pred_check_branch
      %23 = sbr.rel (0) target = $region9
    $region8: #{tpu_custom_call.1} parent=1 // pred_region
      %s25 = ssub.s32 256, 256
      %26 = vsyncadd [#allocation8], %s25
      %s27 = sshll.u32 [#allocation7], 4
      %s28 = int_to_ptr.vmem [resolvable:$true] %s27
      %33 = dma.hbm_to_vmem [thread:$0]  %s1, 256, %s28, [#allocation8], 128, 128, 8
    $region9: #{tpu_custom_call.1} parent=1 // pred_fallthru
      _
    // Predicated region
    $region10: #{tpu_custom_call.1} parent=1 // pred_check
      _
    $region11: #{tpu_custom_call.1} parent=1 // pred_check_branch
      %35 = sbr.rel (0) target = $region13
    $region12: #{tpu_custom_call.1} parent=1 // pred_region
      %36 = dma.done [#allocation5], 256
    $region13: #{tpu_custom_call.1} parent=1 // pred_fallthru
      _
    // Predicated region
    $region14: #{tpu_custom_call.1} parent=1 // pred_check
      _
    $region15: #{tpu_custom_call.1} parent=1 // pred_check_branch
      %38 = sbr.rel (0) target = $region17
    $region16: #{tpu_custom_call.1} parent=1 // pred_region
      %39 = dma.done [#allocation8], 256
    $region17: #{tpu_custom_call.1} parent=1 // pred_fallthru
      _
    %p40 = scmp.eq.s32.totalorder 0, 0
    // Predicated region
    $region18: #{tpu_custom_call.1} parent=1 // pred_check
      %p41 = pneg %p40
    $region19: #{tpu_custom_call.1} parent=1 // pred_check_branch
      %43 = sbr.rel (%p41) target = $region21
    $region20: #{tpu_custom_call.1} parent=1 // pred_region
      %44 = vst [vmem:[#allocation2] sm:$0x1] 0.0
      %45 = vst [vmem:[#allocation3] sm:$0x1] 0.0
    $region21: #{tpu_custom_call.1} parent=1 // pred_fallthru
      _
    %v46 = vld [vmem:[#allocation4] sm:$0xff]
    %v47 = vld [vmem:[#allocation4 + $0x8] sm:$0xff]
    %v48 = vld [vmem:[#allocation7] sm:$0xff]
    %v49 = vld [vmem:[#allocation7 + $0x8] sm:$0xff]
    %v50 = vsub.f32 %v46, %v48
    %v51 = vsub.f32 %v47, %v49
    %v52 = vand.u32 2147483647, %v50
    %v53 = vand.u32 2147483647, %v51
    %v54 = vand.u32 2147483647, %v46
    %v55 = vand.u32 2147483647, %v47
    %v56 = vand.u32 2147483647, %v48
    %v57 = vand.u32 2147483647, %v49
    %v58 = vadd.f32 %v54, %v56
    %v59 = vadd.f32 %v55, %v57
    %v60 = vld [vmem:[#allocation2] sm:$0x1]
    %v61 = vadd.f32 %v52, %v53
    %v62 = vrot.slane %v61, 4
    %v63 = vadd.f32 %v61, %v62
    %v64 = vrot.slane %v63, 2
    %v65 = vadd.f32 %v63, %v64
    %v66 = vrot.slane %v65, 1
    %v67 = vadd.f32 %v65, %v66
    %v68 = vadd.f32 %v60, %v67
    %69 = vst [vmem:[#allocation2] sm:$0x1] %v68
    %v70 = vld [vmem:[#allocation3] sm:$0x1]
    %v71 = vadd.f32 %v58, %v59
    %v72 = vrot.slane %v71, 4
    %v73 = vadd.f32 %v71, %v72
    %v74 = vrot.slane %v73, 2
    %v75 = vadd.f32 %v73, %v74
    %v76 = vrot.slane %v75, 1
    %v77 = vadd.f32 %v75, %v76
    %v78 = vadd.f32 %v70, %v77
    %79 = vst [vmem:[#allocation3] sm:$0x1] %v78
    // Predicated region
    $region22: #{tpu_custom_call.1} parent=1 // pred_check
      %p80 = pneg %p40
    $region23: #{tpu_custom_call.1} parent=1 // pred_check_branch
      %82 = sbr.rel (%p80) target = $region25
    $region24: #{tpu_custom_call.1} parent=1 // pred_region
      %v83 = vld [vmem:[#allocation2] sm:$0x1]
      %vm84 = vcmask 1040384
      %v85 = vsel %vm84, %v83, 0.0
      %86 = vadd.xlane.f32.xlu0 %v85
      %v87 = vpop.xlane.xlu0 %86
      %v88 = vrot.slane %v87, 4
      %v89 = vadd.f32 %v87, %v88
      %v90 = vrot.slane %v89, 2
      %v91 = vadd.f32 %v89, %v90
      %v92 = vrot.slane %v91, 1
      %v93 = vadd.f32 %v91, %v92
      %s94 = vtos %v93
      %v95 = vstv %s94
      %v96 = vld [vmem:[#allocation3] sm:$0x1]
      %v97 = vsel %vm84, %v96, 0.0
      %98 = vadd.xlane.f32.xlu0 %v97
      %v99 = vpop.xlane.xlu0 %98
      %v100 = vrot.slane %v99, 4
      %v101 = vadd.f32 %v99, %v100
      %v102 = vrot.slane %v101, 2
      %v103 = vadd.f32 %v101, %v102
      %v104 = vrot.slane %v103, 1
      %v105 = vadd.f32 %v103, %v104
      %s106 = vtos %v105
      %v107 = vstv %s106
      %v108 = vrcp.pop 2048.0
      %v109 = vmul.f32 %v95, %v108
      %v110 = vadd.f32 %v107, 1e-06
      %v111 = vrcp.pop %v110
      %v112 = vmul.f32 %v109, %v111
      %vm113 = vcmask 0
      %114 = vst.msk [vmem:[#allocation9] sm:$0x1] %vm113, %v112
    $region25: #{tpu_custom_call.1} parent=1 // pred_fallthru
      _
    // Predicated region
    $region26: #{tpu_custom_call.1} parent=1 // pred_check
      _
    $region27: #{tpu_custom_call.1} parent=1 // pred_check_branch
      %116 = sbr.rel (0) target = $region29
    $region28: #{tpu_custom_call.1} parent=1 // pred_region
      %s118 = ssub.s32 16, 16
      %119 = vsyncadd [#allocation6], %s118
      %s121 = sshll.u32 [#allocation9], 4
      %s122 = int_to_ptr.vmem [resolvable:$true] %s121
      %124 = dma.vmem_to_hbm [thread:$0]  %s122, 16, %s2, [#allocation6]
    $region29: #{tpu_custom_call.1} parent=1 // pred_fallthru
      _
    // Predicated region
    $region30: #{tpu_custom_call.1} parent=1 // pred_check
      _
    $region31: #{tpu_custom_call.1} parent=1 // pred_check_branch
      %126 = sbr.rel (0) target = $region33
    $region32: #{tpu_custom_call.1} parent=1 // pred_region
      %127 = dma.done [#allocation6], 16
    $region33: #{tpu_custom_call.1} parent=1 // pred_fallthru
      _
    %128 = vsyncpa [#allocation5], 1
    %129 = vsyncpa [#allocation8], 1
    %130 = vsyncpa [#allocation6], 1

</llo_original>
